<compile_context>
chip_gen: v6e
topology: v6e:2x2x1
jax: 0.10.0
libtpu: 0.0.40
codegen_flags: <defaults>
</compile_context>

<pallas_src>
import math

import jax
import jax.numpy as jnp
from jax.experimental import pallas as pl
from jax.experimental.pallas import tpu as pltpu

LANES = 128
ROW_ALIGN = 16          # block sublane granularity (covers f32 (8,128) and bf16 (16,128))
CHUNK_ROWS = 512        # in-kernel compute/reduce chunk (bounds intermediate VMEM)
MAX_TILE_ROWS = 4096    # grid block rows: (4096,128) f32 = 2 MiB per input per step
NCORES = 2              # leading "parallel" grid axis (both TCs on v7x; trivial loop elsewhere)

# loss hyperparameters (module __init__ defaults)
DICE_EPS = 1.0
SCE_ALPHA = 0.3
SCE_BETA = 1.0
SCE_EPS = 1e-4
K_DICE = 1.0
K_SCE = 0.07
BCE_LOG_CLAMP = -100.0  # PyTorch F.binary_cross_entropy clamps log() at -100


def _round_up(x, m):
    return (x + m - 1) // m * m


def _make_kernel(*, tile_rows, chunk_rows, tiles_per_core, n_blocks,
                 total_blocks, n_elems, targets_are_binary, has_tail):
    n_chunks = tile_rows // chunk_rows
    # binary-target specialization: clamp(t,eps,1-eps) makes the logs constants
    log_eps = max(math.log(SCE_EPS), BCE_LOG_CLAMP)
    log_1me = max(math.log(1.0 - SCE_EPS), BCE_LOG_CLAMP)

    def kernel(x_ref, t_ref, acc_ref):
        c = pl.program_id(0)   # parallel (core) axis
        i = pl.program_id(1)   # arbitrary (reduction) axis

        @pl.when(i == 0)
        def _():
            acc_ref[...] = jnp.zeros_like(acc_ref)

        block = c * tiles_per_core + i

        def vreduce(v):
            # reduce (chunk_rows,128) down to a vreg-shaped (8,128) partial: VPU adds only
            return v.reshape(chunk_rows // 8, 8, LANES).sum(axis=0)

        def accumulate(j, masked):
            start = j * chunk_rows
            if not isinstance(start, int):
                start = pl.multiple_of(start, chunk_rows)
            x = x_ref[pl.ds(start, chunk_rows), :].astype(jnp.float32)
            t = t_ref[pl.ds(start, chunk_rows), :].astype(jnp.float32)

            if masked:
                # Tail block only: elements past the true size (block overhang
                # / lane padding) may hold garbage -> force them to (0, 0)
                # BEFORE the logs so NaN/Inf never reaches the sums.
                row0 = block * tile_rows + j * chunk_rows
                rid = jax.lax.broadcasted_iota(jnp.int32, (chunk_rows, LANES), 0)
                lid = jax.lax.broadcasted_iota(jnp.int32, (chunk_rows, LANES), 1)
                valid = ((row0 + rid) * LANES + lid) < n_elems
                x = jnp.where(valid, x, 0.0)
                t = jnp.where(valid, t, 0.0)

            xt = x * t

            log_x = jnp.maximum(jnp.log(x), BCE_LOG_CLAMP)
            log_1mx = jnp.maximum(jnp.log(1.0 - x), BCE_LOG_CLAMP)
            # -(t*log(x) + (1-t)*log(1-x))
            bce_fwd = -(log_1mx + t * (log_x - log_1mx))

            if targets_are_binary:
                pred = t > 0.5
                log_tc = jnp.where(pred, log_1me, log_eps)
                log_1mtc = jnp.where(pred, log_eps, log_1me)
            else:
                tc = jnp.clip(t, SCE_EPS, 1.0 - SCE_EPS)
                log_tc = jnp.maximum(jnp.log(tc), BCE_LOG_CLAMP)
                log_1mtc = jnp.maximum(jnp.log(1.0 - tc), BCE_LOG_CLAMP)
            # -(x*log(tc) + (1-x)*log(1-tc))
            bce_rev = -(log_1mtc + x * (log_tc - log_1mtc))
            if masked:
                # each padded element would otherwise add -log1p(-eps)
                bce_rev = jnp.where(valid, bce_rev, 0.0)

            acc_ref[0] += vreduce(xt)
            acc_ref[1] += vreduce(x)
            acc_ref[2] += vreduce(t)
            acc_ref[3] += vreduce(bce_fwd)
            acc_ref[4] += vreduce(bce_rev)

        def run_block(masked):
            if n_chunks == 1:
                accumulate(0, masked)
            else:
                @pl.loop(0, n_chunks)
                def _(j):
                    accumulate(j, masked)

        if has_tail:
            @pl.when(block < n_blocks - 1)          # interior blocks: no masking at all
            def _():
                run_block(masked=False)

            @pl.when(block == n_blocks - 1)         # single tail block: masked
            def _():
                run_block(masked=True)
        else:
            if total_blocks == n_blocks:
                run_block(masked=False)             # exact fit: no guards anywhere
            else:
                @pl.when(block < n_blocks)          # skip clamped duplicate blocks
                def _():
                    run_block(masked=False)

    return kernel


def dice_sce_loss(inputs, targets, *, targets_are_binary=False,
                  max_tile_rows=MAX_TILE_ROWS):
    """inputs, targets: same shape (e.g. NCHW); inputs are probabilities in (0,1).

    targets_are_binary=True is exact for {0,1} masks and halves the log count
    (big win on compute-bound v7x).  Inputs may be bf16 to halve HBM traffic.
    """
    assert inputs.shape == targets.shape
    n_elems = int(inputs.size)
    rows = pl.cdiv(n_elems, LANES)

    # Wrapper-side padding (an extra HBM copy) only when the flat size is not
    # lane/sublane aligned; typical NCHW tensors stream straight from HBM.
    # TODO(synk): a pad-free path for lane-ragged sizes would need 1-D blocks.
    pad_needed = (n_elems % LANES != 0) or (rows % ROW_ALIGN != 0)
    rows_in = _round_up(max(rows, ROW_ALIGN), ROW_ALIGN) if pad_needed else rows

    # Grid-block rows: as large as possible (<= max_tile_rows), chunk-aligned
    # when chunked, and never larger than the array's row count.
    tile_rows = min(max_tile_rows, _round_up(pl.cdiv(rows_in, NCORES), ROW_ALIGN))
    if tile_rows > CHUNK_ROWS:
        tile_rows = min(_round_up(tile_rows, CHUNK_ROWS),
                        (max_tile_rows // CHUNK_ROWS) * CHUNK_ROWS)
        chunk_rows = CHUNK_ROWS
    else:
        chunk_rows = tile_rows

    n_blocks = pl.cdiv(rows_in, tile_rows)          # blocks that overlap real data
    ncores = min(NCORES, n_blocks)
    tiles_per_core = pl.cdiv(n_blocks, ncores)
    total_blocks = ncores * tiles_per_core          # may exceed n_blocks (dupes skipped)
    has_tail = (n_blocks * tile_rows * LANES) != n_elems

    def prep(a):
        flat = a.reshape(-1)                        # bitcast for contiguous arrays
        if pad_needed:
            flat = jnp.pad(flat, (0, rows_in * LANES - n_elems))
        return flat.reshape(rows_in, LANES)

    x2d = prep(inputs)
    t2d = prep(targets)

    kernel = _make_kernel(tile_rows=tile_rows, chunk_rows=chunk_rows,
                          tiles_per_core=tiles_per_core, n_blocks=n_blocks,
                          total_blocks=total_blocks, n_elems=n_elems,
                          targets_are_binary=targets_are_binary,
                          has_tail=has_tail)

    if total_blocks == n_blocks:
        in_map = lambda c, i: (c * tiles_per_core + i, 0)
    else:
        # Clamp grid-only duplicate blocks onto the last real block so the DMA
        # stays in bounds; the kernel skips their accumulation via pl.when.
        in_map = lambda c, i: (jnp.minimum(c * tiles_per_core + i, n_blocks - 1), 0)
    in_spec = pl.BlockSpec((tile_rows, LANES), in_map)

    n_logs = 2 if targets_are_binary else 4
    cost = pl.CostEstimate(
        flops=15 * n_elems,
        transcendentals=n_logs * n_elems,
        bytes_accessed=(inputs.dtype.itemsize + targets.dtype.itemsize) * n_elems,
    )

    # partials[c, k, :, :] = core c's (8,128) vector partial of sum k
    partials = pl.pallas_call(
        kernel,
        out_shape=jax.ShapeDtypeStruct((ncores, 5, 8, LANES), jnp.float32),
        grid_spec=pltpu.PrefetchScalarGridSpec(
            num_scalar_prefetch=0,
            grid=(ncores, tiles_per_core),
            in_specs=[in_spec, in_spec],
            out_specs=pl.BlockSpec((None, 5, 8, LANES), lambda c, i: (c, 0, 0, 0)),
        ),
        compiler_params=pltpu.CompilerParams(
            dimension_semantics=("parallel", "arbitrary"),
            vmem_limit_bytes=32 * 1024 * 1024,
        ),
        cost_estimate=cost,
    )(x2d, t2d)

    # tiny final cross-lane/core reduction + scalar combination in plain JAX
    sums = jnp.sum(partials, axis=(0, 2, 3))        # (5,)
    sum_xt, sum_x, sum_t, bce_fwd, bce_rev = (sums[j] for j in range(5))
    n = jnp.float32(n_elems)

    dice = (2.0 * sum_xt + DICE_EPS) / (sum_x + sum_t + DICE_EPS)
    dice_loss = 1.0 - dice
    cross_ent = bce_fwd / n
    reverse_cross_ent = bce_rev / n
    sce = SCE_ALPHA * cross_ent + SCE_BETA * reverse_cross_ent
    return K_SCE * sce + K_DICE * dice_loss


def _reference(inputs, targets):
    # pure-JAX reference with the same PyTorch semantics
    x = inputs.astype(jnp.float32)
    t = targets.astype(jnp.float32)
    inter = jnp.sum(x * t)
    dice = (2.0 * inter + DICE_EPS) / (jnp.sum(x) + jnp.sum(t) + DICE_EPS)
    dice_loss = 1.0 - dice
    ce = jnp.mean(-(t * jnp.maximum(jnp.log(x), BCE_LOG_CLAMP)
                    + (1.0 - t) * jnp.maximum(jnp.log(1.0 - x), BCE_LOG_CLAMP)))
    tc = jnp.clip(t, SCE_EPS, 1.0 - SCE_EPS)
    rce = jnp.mean(-(x * jnp.maximum(jnp.log(tc), BCE_LOG_CLAMP)
                     + (1.0 - x) * jnp.maximum(jnp.log(1.0 - tc), BCE_LOG_CLAMP)))
    sce = SCE_ALPHA * ce + SCE_BETA * rce
    return K_SCE * sce + K_DICE * dice_loss


if __name__ == "__main__":
    key = jax.random.PRNGKey(0)

    def make_data(k, shape, binary_targets, dtype=jnp.float32):
        kx, kt = jax.random.split(k)
        x = jax.random.uniform(kx, shape, dtype=jnp.float32,
                               minval=1e-3, maxval=1.0 - 1e-3)
        if binary_targets:
            t = (jax.random.uniform(kt, shape) > 0.5).astype(jnp.float32)
        else:
            t = jax.random.uniform(kt, shape, dtype=jnp.float32)
        return x.astype(dtype), t.astype(dtype)

    # main NCHW demo (2,4,16,16): single full block, binary masks
    x, t = make_data(key, (2, 4, 16, 16), binary_targets=True)
    loss = jax.block_until_ready(dice_sce_loss(x, t))
    ref = _reference(x, t)
    assert jnp.allclose(loss, ref, rtol=1e-4, atol=1e-5), (loss, ref)
    loss_bin = jax.block_until_ready(dice_sce_loss(x, t, targets_are_binary=True))
    assert jnp.allclose(loss_bin, ref, rtol=1e-4, atol=1e-5), (loss_bin, ref)

    # extra coverage at small sizes: (shape, binary targets, dtype, max_tile_rows)
    checks = [
        ((2, 3, 15, 17), False, jnp.float32, MAX_TILE_ROWS),   # ragged -> pad + tail mask
        ((2, 4, 16, 48), True, jnp.float32, 16),               # multi-block + clamped dupe block
        ((2, 4, 64, 64), True, jnp.bfloat16, MAX_TILE_ROWS),   # bf16 streaming, 2 blocks
        ((2, 4, 96, 192), False, jnp.float32, MAX_TILE_ROWS),  # multi-chunk + tail overhang
    ]
    for idx, (shape, binary, dtype, mtr) in enumerate(checks):
        kk = jax.random.fold_in(key, idx + 1)
        xi, ti = make_data(kk, shape, binary_targets=binary, dtype=dtype)
        got = jax.block_until_ready(
            dice_sce_loss(xi, ti, targets_are_binary=binary, max_tile_rows=mtr))
        want = _reference(xi, ti)
        assert jnp.allclose(got, want, rtol=1e-4, atol=1e-4), (shape, got, want)

    print("KERNEL_OK")
</pallas_src>

<mosaic_0001>
module attributes {stable_mosaic.version = 11 : i64} {
  func.func @kernel(%arg0: i32, %arg1: i32, %arg2: memref<16x128xf32, #tpu.memory_space<vmem>>, %arg3: memref<16x128xf32, #tpu.memory_space<vmem>>, %arg4: memref<1x5x8x128xf32, #tpu.memory_space<vmem>>) attributes {dimension_semantics = [#tpu.dimension_semantics<parallel>, #tpu.dimension_semantics<arbitrary>], iteration_bounds = array<i64: 1, 1>, scalar_prefetch = 0 : i64, scratch_operands = 0 : i64, tpu.core_type = #tpu.core_type<tc>, window_params = [{transform_indices = @transform_0, window_bounds = array<i64: 16, 128>}, {transform_indices = @transform_1, window_bounds = array<i64: 16, 128>}, {transform_indices = @transform_2, window_bounds = array<i64: 1, 5, 8, 128>}]} {
    %c0_i32 = arith.constant 0 : i32
    %0 = arith.cmpi eq, %arg1, %c0_i32 : i32
    %1 = arith.extui %0 : i1 to i32
    %c0_i32_0 = arith.constant 0 : i32
    %2 = arith.cmpi ne, %1, %c0_i32_0 : i32
    scf.if %2 {
      %cst_54 = arith.constant 0.000000e+00 : f32
      %76 = vector.broadcast %cst_54 : f32 to vector<5x8x128xf32>
      %c0_55 = arith.constant 0 : index
      %c0_56 = arith.constant 0 : index
      %c0_57 = arith.constant 0 : index
      %c0_58 = arith.constant 0 : index
      %77 = vector.load %arg4[%c0_55, %c0_56, %c0_57, %c0_58] : memref<1x5x8x128xf32, #tpu.memory_space<vmem>>, vector<1x5x8x128xf32>
      %78 = vector.shape_cast %77 : vector<1x5x8x128xf32> to vector<5x8x128xf32>
      %79 = vector.shape_cast %76 : vector<5x8x128xf32> to vector<1x5x8x128xf32>
      tpu.vector_store %arg4[%c0_55, %c0_56, %c0_57, %c0_58], %79 {strides = array<i32>} : memref<1x5x8x128xf32, #tpu.memory_space<vmem>>, vector<1x5x8x128xf32>,
    } else {
    }
    %c0 = arith.constant 0 : index
    %c0_1 = arith.constant 0 : index
    %3 = vector.load %arg2[%c0, %c0_1] : memref<16x128xf32, #tpu.memory_space<vmem>>, vector<16x128xf32>
    %c0_2 = arith.constant 0 : index
    %c0_3 = arith.constant 0 : index
    %4 = vector.load %arg3[%c0_2, %c0_3] : memref<16x128xf32, #tpu.memory_space<vmem>>, vector<16x128xf32>
    %5 = arith.mulf %3, %4 : vector<16x128xf32>
    %6 = math.log %3 : vector<16x128xf32>
    %cst = arith.constant -1.000000e+02 : f32
    %7 = vector.broadcast %cst : f32 to vector<16x128xf32>
    %8 = arith.maximumf %6, %7 : vector<16x128xf32>
    %cst_4 = arith.constant 1.000000e+00 : f32
    %9 = vector.broadcast %cst_4 : f32 to vector<16x128xf32>
    %10 = arith.subf %9, %3 : vector<16x128xf32>
    %11 = math.log %10 : vector<16x128xf32>
    %cst_5 = arith.constant -1.000000e+02 : f32
    %12 = vector.broadcast %cst_5 : f32 to vector<16x128xf32>
    %13 = arith.maximumf %11, %12 : vector<16x128xf32>
    %14 = arith.subf %8, %13 : vector<16x128xf32>
    %15 = arith.mulf %4, %14 : vector<16x128xf32>
    %16 = arith.addf %13, %15 : vector<16x128xf32>
    %cst_6 = arith.constant 0.000000e+00 : f32
    %17 = vector.broadcast %cst_6 : f32 to vector<16x128xf32>
    %18 = arith.subf %17, %16 : vector<16x128xf32>
    %cst_7 = arith.constant 9.99999974E-5 : f32
    %cst_8 = arith.constant 0.999899983 : f32
    %19 = vector.broadcast %cst_7 : f32 to vector<16x128xf32>
    %20 = arith.maximumf %19, %4 : vector<16x128xf32>
    %21 = vector.broadcast %cst_8 : f32 to vector<16x128xf32>
    %22 = arith.minimumf %21, %20 : vector<16x128xf32>
    %23 = math.log %22 : vector<16x128xf32>
    %cst_9 = arith.constant -1.000000e+02 : f32
    %24 = vector.broadcast %cst_9 : f32 to vector<16x128xf32>
    %25 = arith.maximumf %23, %24 : vector<16x128xf32>
    %cst_10 = arith.constant 1.000000e+00 : f32
    %26 = vector.broadcast %cst_10 : f32 to vector<16x128xf32>
    %27 = arith.subf %26, %22 : vector<16x128xf32>
    %28 = math.log %27 : vector<16x128xf32>
    %cst_11 = arith.constant -1.000000e+02 : f32
    %29 = vector.broadcast %cst_11 : f32 to vector<16x128xf32>
    %30 = arith.maximumf %28, %29 : vector<16x128xf32>
    %31 = arith.subf %25, %30 : vector<16x128xf32>
    %32 = arith.mulf %3, %31 : vector<16x128xf32>
    %33 = arith.addf %30, %32 : vector<16x128xf32>
    %cst_12 = arith.constant 0.000000e+00 : f32
    %34 = vector.broadcast %cst_12 : f32 to vector<16x128xf32>
    %35 = arith.subf %34, %33 : vector<16x128xf32>
    %c0_13 = arith.constant 0 : index
    %c0_14 = arith.constant 0 : index
    %c0_15 = arith.constant 0 : index
    %c0_16 = arith.constant 0 : index
    %36 = vector.load %arg4[%c0_13, %c0_14, %c0_15, %c0_16] : memref<1x5x8x128xf32, #tpu.memory_space<vmem>>, vector<1x1x8x128xf32>
    %37 = vector.shape_cast %36 : vector<1x1x8x128xf32> to vector<8x128xf32>
    %38 = vector.shape_cast %5 : vector<16x128xf32> to vector<2x8x128xf32>
    %cst_17 = arith.constant dense<0.000000e+00> : vector<8x128xf32>
    %39 = vector.multi_reduction <add>, %38, %cst_17 [0] : vector<2x8x128xf32> to vector<8x128xf32>
    %40 = arith.addf %37, %39 : vector<8x128xf32>
    %c0_18 = arith.constant 0 : index
    %c0_19 = arith.constant 0 : index
    %c0_20 = arith.constant 0 : index
    %c0_21 = arith.constant 0 : index
    %41 = vector.load %arg4[%c0_18, %c0_19, %c0_20, %c0_21] : memref<1x5x8x128xf32, #tpu.memory_space<vmem>>, vector<1x1x8x128xf32>
    %42 = vector.shape_cast %41 : vector<1x1x8x128xf32> to vector<8x128xf32>
    %43 = vector.shape_cast %40 : vector<8x128xf32> to vector<1x1x8x128xf32>
    tpu.vector_store %arg4[%c0_18, %c0_19, %c0_20, %c0_21], %43 {strides = array<i32>} : memref<1x5x8x128xf32, #tpu.memory_space<vmem>>, vector<1x1x8x128xf32>,
    %c0_22 = arith.constant 0 : index
    %c1 = arith.constant 1 : index
    %c0_23 = arith.constant 0 : index
    %c0_24 = arith.constant 0 : index
    %44 = vector.load %arg4[%c0_22, %c1, %c0_23, %c0_24] : memref<1x5x8x128xf32, #tpu.memory_space<vmem>>, vector<1x1x8x128xf32>
    %45 = vector.shape_cast %44 : vector<1x1x8x128xf32> to vector<8x128xf32>
    %46 = vector.shape_cast %3 : vector<16x128xf32> to vector<2x8x128xf32>
    %cst_25 = arith.constant dense<0.000000e+00> : vector<8x128xf32>
    %47 = vector.multi_reduction <add>, %46, %cst_25 [0] : vector<2x8x128xf32> to vector<8x128xf32>
    %48 = arith.addf %45, %47 : vector<8x128xf32>
    %c0_26 = arith.constant 0 : index
    %c1_27 = arith.constant 1 : index
    %c0_28 = arith.constant 0 : index
    %c0_29 = arith.constant 0 : index
    %49 = vector.load %arg4[%c0_26, %c1_27, %c0_28, %c0_29] : memref<1x5x8x128xf32, #tpu.memory_space<vmem>>, vector<1x1x8x128xf32>
    %50 = vector.shape_cast %49 : vector<1x1x8x128xf32> to vector<8x128xf32>
    %51 = vector.shape_cast %48 : vector<8x128xf32> to vector<1x1x8x128xf32>
    tpu.vector_store %arg4[%c0_26, %c1_27, %c0_28, %c0_29], %51 {strides = array<i32>} : memref<1x5x8x128xf32, #tpu.memory_space<vmem>>, vector<1x1x8x128xf32>,
    %c0_30 = arith.constant 0 : index
    %c2 = arith.constant 2 : index
    %c0_31 = arith.constant 0 : index
    %c0_32 = arith.constant 0 : index
    %52 = vector.load %arg4[%c0_30, %c2, %c0_31, %c0_32] : memref<1x5x8x128xf32, #tpu.memory_space<vmem>>, vector<1x1x8x128xf32>
    %53 = vector.shape_cast %52 : vector<1x1x8x128xf32> to vector<8x128xf32>
    %54 = vector.shape_cast %4 : vector<16x128xf32> to vector<2x8x128xf32>
    %cst_33 = arith.constant dense<0.000000e+00> : vector<8x128xf32>
    %55 = vector.multi_reduction <add>, %54, %cst_33 [0] : vector<2x8x128xf32> to vector<8x128xf32>
    %56 = arith.addf %53, %55 : vector<8x128xf32>
    %c0_34 = arith.constant 0 : index
    %c2_35 = arith.constant 2 : index
    %c0_36 = arith.constant 0 : index
    %c0_37 = arith.constant 0 : index
    %57 = vector.load %arg4[%c0_34, %c2_35, %c0_36, %c0_37] : memref<1x5x8x128xf32, #tpu.memory_space<vmem>>, vector<1x1x8x128xf32>
    %58 = vector.shape_cast %57 : vector<1x1x8x128xf32> to vector<8x128xf32>
    %59 = vector.shape_cast %56 : vector<8x128xf32> to vector<1x1x8x128xf32>
    tpu.vector_store %arg4[%c0_34, %c2_35, %c0_36, %c0_37], %59 {strides = array<i32>} : memref<1x5x8x128xf32, #tpu.memory_space<vmem>>, vector<1x1x8x128xf32>,
    %c0_38 = arith.constant 0 : index
    %c3 = arith.constant 3 : index
    %c0_39 = arith.constant 0 : index
    %c0_40 = arith.constant 0 : index
    %60 = vector.load %arg4[%c0_38, %c3, %c0_39, %c0_40] : memref<1x5x8x128xf32, #tpu.memory_space<vmem>>, vector<1x1x8x128xf32>
    %61 = vector.shape_cast %60 : vector<1x1x8x128xf32> to vector<8x128xf32>
    %62 = vector.shape_cast %18 : vector<16x128xf32> to vector<2x8x128xf32>
    %cst_41 = arith.constant dense<0.000000e+00> : vector<8x128xf32>
    %63 = vector.multi_reduction <add>, %62, %cst_41 [0] : vector<2x8x128xf32> to vector<8x128xf32>
    %64 = arith.addf %61, %63 : vector<8x128xf32>
    %c0_42 = arith.constant 0 : index
    %c3_43 = arith.constant 3 : index
    %c0_44 = arith.constant 0 : index
    %c0_45 = arith.constant 0 : index
    %65 = vector.load %arg4[%c0_42, %c3_43, %c0_44, %c0_45] : memref<1x5x8x128xf32, #tpu.memory_space<vmem>>, vector<1x1x8x128xf32>
    %66 = vector.shape_cast %65 : vector<1x1x8x128xf32> to vector<8x128xf32>
    %67 = vector.shape_cast %64 : vector<8x128xf32> to vector<1x1x8x128xf32>
    tpu.vector_store %arg4[%c0_42, %c3_43, %c0_44, %c0_45], %67 {strides = array<i32>} : memref<1x5x8x128xf32, #tpu.memory_space<vmem>>, vector<1x1x8x128xf32>,
    %c0_46 = arith.constant 0 : index
    %c4 = arith.constant 4 : index
    %c0_47 = arith.constant 0 : index
    %c0_48 = arith.constant 0 : index
    %68 = vector.load %arg4[%c0_46, %c4, %c0_47, %c0_48] : memref<1x5x8x128xf32, #tpu.memory_space<vmem>>, vector<1x1x8x128xf32>
    %69 = vector.shape_cast %68 : vector<1x1x8x128xf32> to vector<8x128xf32>
    %70 = vector.shape_cast %35 : vector<16x128xf32> to vector<2x8x128xf32>
    %cst_49 = arith.constant dense<0.000000e+00> : vector<8x128xf32>
    %71 = vector.multi_reduction <add>, %70, %cst_49 [0] : vector<2x8x128xf32> to vector<8x128xf32>
    %72 = arith.addf %69, %71 : vector<8x128xf32>
    %c0_50 = arith.constant 0 : index
    %c4_51 = arith.constant 4 : index
    %c0_52 = arith.constant 0 : index
    %c0_53 = arith.constant 0 : index
    %73 = vector.load %arg4[%c0_50, %c4_51, %c0_52, %c0_53] : memref<1x5x8x128xf32, #tpu.memory_space<vmem>>, vector<1x1x8x128xf32>
    %74 = vector.shape_cast %73 : vector<1x1x8x128xf32> to vector<8x128xf32>
    %75 = vector.shape_cast %72 : vector<8x128xf32> to vector<1x1x8x128xf32>
    tpu.vector_store %arg4[%c0_50, %c4_51, %c0_52, %c0_53], %75 {strides = array<i32>} : memref<1x5x8x128xf32, #tpu.memory_space<vmem>>, vector<1x1x8x128xf32>,
    return
  }
  func.func @transform_0(%arg0: i32, %arg1: i32) -> (i32, i32) {
    %c1_i32 = arith.constant 1 : i32
    %0 = arith.muli %arg0, %c1_i32 : i32
    %1 = arith.addi %0, %arg1 : i32
    %c0_i32 = arith.constant 0 : i32
    %c0_i32_0 = arith.constant 0 : i32
    return %1, %c0_i32 : i32, i32
  }
  func.func @transform_1(%arg0: i32, %arg1: i32) -> (i32, i32) {
    %c1_i32 = arith.constant 1 : i32
    %0 = arith.muli %arg0, %c1_i32 : i32
    %1 = arith.addi %0, %arg1 : i32
    %c0_i32 = arith.constant 0 : i32
    %c0_i32_0 = arith.constant 0 : i32
    return %1, %c0_i32 : i32, i32
  }
  func.func @transform_2(%arg0: i32, %arg1: i32) -> (i32, i32, i32, i32) {
    %c0_i32 = arith.constant 0 : i32
    %c0_i32_0 = arith.constant 0 : i32
    %c0_i32_1 = arith.constant 0 : i32
    %c0_i32_2 = arith.constant 0 : i32
    return %arg0, %c0_i32, %c0_i32_0, %c0_i32_1 : i32, i32, i32, i32
  }
}

</mosaic_0001>

<llo_original>
// kernel: tpu_custom_call.1
$region0: #{tpu_custom_call.1}
  #allocation0 [shape = 'u32[]', space=smem, size = 0x4, offset = 0x4, fixed_abs, tag = 'smem constant byte address 0x4 - core index']
  #allocation1 [shape = 'u32[144,128]{1,0:T(1,128)}', space=vmem, size = 0x12000, scoped, tag = 'internal scratch']
  %s0 = inlined_call_operand.hbm [shape: f32[16,128], index: 0, kind: input, shape index: {}]
  %s1 = inlined_call_operand.hbm [shape: f32[16,128], index: 1, kind: input, shape index: {}]
  %s2 = inlined_call_operand.hbm [shape: f32[1,5,8,128], index: 2, kind: output, shape index: {}]
  %s3 = sld [smem:[#allocation0]]
  $region30: #{tpu_custom_call.1} parent=0
    _
  %s5 = ssub.s32 1, %s3
  %s6 = scalar_select 0, %s5, %s3
  $region1: #{tpu_custom_call.1} parent=0
    #allocation2 [shape = 'u8[8192]{0}', space=vmem, size = 0x2000, scoped, tag = 'input window, operand 0, single buffered']
    #allocation3 [shape = 's32[1]{0}', space=sflag, size = 0x4, scoped, tag = 'scoped memory for tpu_custom_call.1']
    #allocation4 [shape = 's32[1]{0}', space=sflag, size = 0x4, scoped, tag = 'scoped memory for tpu_custom_call.1']
    #allocation5 [shape = 'u8[8192]{0}', space=vmem, size = 0x2000, scoped, tag = 'input window, operand 1, single buffered']
    #allocation6 [shape = 's32[1]{0}', space=sflag, size = 0x4, scoped, tag = 'scoped memory for tpu_custom_call.1']
    #allocation7 [shape = 'u8[20480]{0}', space=vmem, size = 0x5000, scoped, tag = 'output window, operand 0, single buffered']
    %7 = vsyncpa [#allocation3], 0
    %8 = vsyncpa [#allocation6], 0
    %9 = vsyncpa [#allocation4], 0
    // Predicated region
    $region2: #{tpu_custom_call.1} parent=1 // pred_check
      _
    $region3: #{tpu_custom_call.1} parent=1 // pred_check_branch
      %11 = sbr.rel (0) target = $region5
    $region4: #{tpu_custom_call.1} parent=1 // pred_region
      %s12 = sadd.s32 0, 0
      %s13 = smul.u32 2, %s12
      %s15 = ssub.s32 256, 256
      %16 = vsyncadd [#allocation3], %s15
      %s17 = smul.addr %s13, 128
      %s18 = scalar_lea.hbm %s0, %s17
      %s19 = sshll.u32 [#allocation2], 4
      %s20 = int_to_ptr.vmem [resolvable:$true] %s19
      %25 = dma.hbm_to_vmem [thread:$0]  %s18, 256, %s20, [#allocation3], 128, 128, 8
    $region5: #{tpu_custom_call.1} parent=1 // pred_fallthru
      _
    // Predicated region
    $region6: #{tpu_custom_call.1} parent=1 // pred_check
      _
    $region7: #{tpu_custom_call.1} parent=1 // pred_check_branch
      %27 = sbr.rel (0) target = $region9
    $region8: #{tpu_custom_call.1} parent=1 // pred_region
      %s28 = sadd.s32 0, 0
      %s29 = smul.u32 2, %s28
      %s31 = ssub.s32 256, 256
      %32 = vsyncadd [#allocation6], %s31
      %s33 = smul.addr %s29, 128
      %s34 = scalar_lea.hbm %s1, %s33
      %s35 = sshll.u32 [#allocation5], 4
      %s36 = int_to_ptr.vmem [resolvable:$true] %s35
      %41 = dma.hbm_to_vmem [thread:$0]  %s34, 256, %s36, [#allocation6], 128, 128, 8
    $region9: #{tpu_custom_call.1} parent=1 // pred_fallthru
      _
    // Predicated region
    $region10: #{tpu_custom_call.1} parent=1 // pred_check
      _
    $region11: #{tpu_custom_call.1} parent=1 // pred_check_branch
      %43 = sbr.rel (0) target = $region13
    $region12: #{tpu_custom_call.1} parent=1 // pred_region
      %44 = dma.done [#allocation3], 256
    $region13: #{tpu_custom_call.1} parent=1 // pred_fallthru
      _
    // Predicated region
    $region14: #{tpu_custom_call.1} parent=1 // pred_check
      _
    $region15: #{tpu_custom_call.1} parent=1 // pred_check_branch
      %46 = sbr.rel (0) target = $region17
    $region16: #{tpu_custom_call.1} parent=1 // pred_region
      %47 = dma.done [#allocation6], 256
    $region17: #{tpu_custom_call.1} parent=1 // pred_fallthru
      _
    %s48 = sadd.s32 0, 0
    %s49 = smul.u32 2, %s48
    %s50 = sadd.s32 0, 0
    %s51 = smul.u32 2, %s50
    %p52 = scmp.eq.s32.totalorder 0, 0
    // Predicated region
    $region18: #{tpu_custom_call.1} parent=1 // pred_check
      %p53 = pneg %p52
    $region19: #{tpu_custom_call.1} parent=1 // pred_check_branch
      %55 = sbr.rel (%p53) target = $region21
    $region20: #{tpu_custom_call.1} parent=1 // pred_region
      %56 = vst [vmem:[#allocation7] sm:$0xff] 0.0
      %57 = vst [vmem:[#allocation7 + $0x8] sm:$0xff] 0.0
      %58 = vst [vmem:[#allocation7 + $0x10] sm:$0xff] 0.0
      %59 = vst [vmem:[#allocation7 + $0x18] sm:$0xff] 0.0
      %60 = vst [vmem:[#allocation7 + $0x20] sm:$0xff] 0.0
    $region21: #{tpu_custom_call.1} parent=1 // pred_fallthru
      _
    %v61 = vld [vmem:[#allocation2] sm:$0xff]
    %v62 = vld [vmem:[#allocation2 + $0x8] sm:$0xff]
    %v63 = vld [vmem:[#allocation5] sm:$0xff]
    %v64 = vld [vmem:[#allocation5 + $0x8] sm:$0xff]
    %v65 = vmul.f32 %v61, %v63
    %v66 = vmul.f32 %v62, %v64
    %v67 = vlog2.pop %v61
    %v68 = vmul.f32 %v67, 0.6931472
    %v69 = vlog2.pop %v62
    %v70 = vmul.f32 %v69, 0.6931472
    %v71 = vmax.f32 %v68, -100.0
    %v72 = vmax.f32 %v70, -100.0
    %v73 = vsub.f32 1.0, %v61
    %v74 = vsub.f32 1.0, %v62
    %v75 = vlog2.pop %v73
    %v76 = vmul.f32 %v75, 0.6931472
    %v77 = vlog2.pop %v74
    %v78 = vmul.f32 %v77, 0.6931472
    %v79 = vmax.f32 %v76, -100.0
    %v80 = vmax.f32 %v78, -100.0
    %v81 = vsub.f32 %v71, %v79
    %v82 = vsub.f32 %v72, %v80
    %v83 = vmul.f32 %v63, %v81
    %v84 = vmul.f32 %v64, %v82
    %v85 = vadd.f32 %v79, %v83
    %v86 = vadd.f32 %v80, %v84
    %v87 = vsub.f32 0.0, %v85
    %v88 = vsub.f32 0.0, %v86
    %v89 = vmax.f32 %v63, 0.0001
    %v90 = vmax.f32 %v64, 0.0001
    %v91 = vmin.f32 %v89, 0.9999
    %v92 = vmin.f32 %v90, 0.9999
    %v93 = vlog2.pop %v91
    %v94 = vmul.f32 %v93, 0.6931472
    %v95 = vlog2.pop %v92
    %v96 = vmul.f32 %v95, 0.6931472
    %v97 = vmax.f32 %v94, -100.0
    %v98 = vmax.f32 %v96, -100.0
    %v99 = vsub.f32 1.0, %v91
    %v100 = vsub.f32 1.0, %v92
    %v101 = vlog2.pop %v99
    %v102 = vmul.f32 %v101, 0.6931472
    %v103 = vlog2.pop %v100
    %v104 = vmul.f32 %v103, 0.6931472
    %v105 = vmax.f32 %v102, -100.0
    %v106 = vmax.f32 %v104, -100.0
    %v107 = vsub.f32 %v97, %v105
    %v108 = vsub.f32 %v98, %v106
    %v109 = vmul.f32 %v61, %v107
    %v110 = vmul.f32 %v62, %v108
    %v111 = vadd.f32 %v105, %v109
    %v112 = vadd.f32 %v106, %v110
    %v113 = vsub.f32 0.0, %v111
    %v114 = vsub.f32 0.0, %v112
    %v115 = vld [vmem:[#allocation7] sm:$0xff]
    %v116 = vadd.f32 %v65, %v66
    %v117 = vadd.f32 %v115, %v116
    %118 = vst [vmem:[#allocation7] sm:$0xff] %v117
    %s119 = scalar_lea.vmem [#allocation7], 8
    %v120 = vld [vmem:[%s119] sm:$0xff]
    %v121 = vadd.f32 %v61, %v62
    %v122 = vadd.f32 %v120, %v121
    %123 = vst [vmem:[%s119] sm:$0xff] %v122
    %s124 = scalar_lea.vmem [#allocation7], 16
    %v125 = vld [vmem:[%s124] sm:$0xff]
    %v126 = vadd.f32 %v63, %v64
    %v127 = vadd.f32 %v125, %v126
    %128 = vst [vmem:[%s124] sm:$0xff] %v127
    %s129 = scalar_lea.vmem [#allocation7], 24
    %v130 = vld [vmem:[%s129] sm:$0xff]
    %v131 = vadd.f32 %v87, %v88
    %v132 = vadd.f32 %v130, %v131
    %133 = vst [vmem:[%s129] sm:$0xff] %v132
    %s134 = scalar_lea.vmem [#allocation7], 32
    %v135 = vld [vmem:[%s134] sm:$0xff]
    %v136 = vadd.f32 %v113, %v114
    %v137 = vadd.f32 %v135, %v136
    %138 = vst [vmem:[%s134] sm:$0xff] %v137
    // Predicated region
    $region22: #{tpu_custom_call.1} parent=1 // pred_check
      _
    $region23: #{tpu_custom_call.1} parent=1 // pred_check_branch
      %140 = sbr.rel (0) target = $region25
    $region24: #{tpu_custom_call.1} parent=1 // pred_region
      %s142 = ssub.s32 640, 640
      %143 = vsyncadd [#allocation4], %s142
      %s144 = sshll.u32 [#allocation7], 4
      %s145 = int_to_ptr.vmem [resolvable:$true] %s144
      %150 = dma.vmem_to_hbm [thread:$0]  %s145, 640, %s2, [#allocation4], 128, 128, 8
    $region25: #{tpu_custom_call.1} parent=1 // pred_fallthru
      _
    // Predicated region
    $region26: #{tpu_custom_call.1} parent=1 // pred_check
      _
    $region27: #{tpu_custom_call.1} parent=1 // pred_check_branch
      %152 = sbr.rel (0) target = $region29
    $region28: #{tpu_custom_call.1} parent=1 // pred_region
      %153 = dma.done [#allocation4], 640
    $region29: #{tpu_custom_call.1} parent=1 // pred_fallthru
      _
    %154 = vsyncpa [#allocation3], 1
    %155 = vsyncpa [#allocation6], 1
    %156 = vsyncpa [#allocation4], 1

</llo_original>
